<compile_context>
chip_gen: v6e
topology: v6e:2x2x1
jax: 0.10.0
libtpu: 0.0.40
codegen_flags: <defaults>
</compile_context>

<pallas_src>
import functools

import jax
import jax.numpy as jnp
from jax.experimental import pallas as pl
from jax.experimental.pallas import tpu as pltpu

_EPS = 1e-5  # nn.LayerNorm default


def _round_up(x, m):
    return ((x + m - 1) // m) * m


def _prenorm_kernel(x_ref, gamma_ref, beta_ref, w_ref, b_ref, o_ref, *, d_valid):
    # x_ref: (TR, Dp) row tile; gamma/beta/b: (1, Dp); w: (Dp, Dp)
    x = x_ref[...].astype(jnp.float32)
    tr, dp = x.shape
    inv_d = jnp.float32(1.0 / d_valid)

    # LayerNorm over the (real) feature axis.  Padded lanes of x are zero, so
    # the raw sum is already correct; the centered values in padded lanes are
    # masked out before the variance sum.
    mean = jnp.sum(x, axis=-1, keepdims=True) * inv_d
    centered = x - mean
    if dp != d_valid:
        lane = jax.lax.broadcasted_iota(jnp.int32, (tr, dp), 1)
        centered = jnp.where(lane < d_valid, centered, 0.0)
    var = jnp.sum(centered * centered, axis=-1, keepdims=True) * inv_d
    xhat = centered * jax.lax.rsqrt(var + _EPS)
    y = xhat * gamma_ref[...].astype(jnp.float32) + beta_ref[...].astype(jnp.float32)

    # fn := Linear(dim, dim) applied to the normalized activations.
    # Feed the MXU operands in the weight's native dtype (bf16 weights -> bf16
    # MXU path); accumulate in f32.
    out = jnp.dot(y.astype(w_ref.dtype), w_ref[...],
                  preferred_element_type=jnp.float32)
    out = out + b_ref[...].astype(jnp.float32)
    o_ref[...] = out.astype(o_ref.dtype)


@functools.partial(jax.jit, static_argnames=("block_rows",))
def prenorm_forward(x, gamma, beta, w, b, *, block_rows=256):
    """x: (B, N, D) -> (B, N, D), computing Linear(LayerNorm(x))."""
    B, N, D = x.shape
    rows = B * N

    # Lane-dense feature dim (multiple of 128) and sublane-aligned row tiles.
    Dp = _round_up(D, 128)
    br = min(block_rows, _round_up(rows, 8))
    rows_p = _round_up(rows, br)

    x2 = x.reshape(rows, D)
    if rows_p != rows or Dp != D:
        x2 = jnp.pad(x2, ((0, rows_p - rows), (0, Dp - D)))
    gamma2 = jnp.pad(gamma, (0, Dp - D)).reshape(1, Dp)
    beta2 = jnp.pad(beta, (0, Dp - D)).reshape(1, Dp)
    w2 = jnp.pad(w, ((0, Dp - D), (0, Dp - D)))
    b2 = jnp.pad(b, (0, Dp - D)).reshape(1, Dp)

    kernel = functools.partial(_prenorm_kernel, d_valid=D)
    out2 = pl.pallas_call(
        kernel,
        out_shape=jax.ShapeDtypeStruct((rows_p, Dp), x.dtype),
        grid=(rows_p // br,),
        in_specs=[
            pl.BlockSpec((br, Dp), lambda i: (i, 0)),   # x row tile
            pl.BlockSpec((1, Dp), lambda i: (0, 0)),    # gamma
            pl.BlockSpec((1, Dp), lambda i: (0, 0)),    # beta
            pl.BlockSpec((Dp, Dp), lambda i: (0, 0)),   # fn weight (resident)
            pl.BlockSpec((1, Dp), lambda i: (0, 0)),    # fn bias
        ],
        out_specs=pl.BlockSpec((br, Dp), lambda i: (i, 0)),
        compiler_params=pltpu.CompilerParams(
            dimension_semantics=("parallel",),
            vmem_limit_bytes=64 * 1024 * 1024,
        ),
    )(x2, gamma2, beta2, w2, b2)
    # TODO(synk): for very large D (>=2048 f32) on v7x, add a K/N grid axis with
    # an f32 accumulator instead of holding the full (D, D) weight resident.
    return out2[:rows, :D].reshape(B, N, D)


def _reference(x, gamma, beta, w, b):
    xf = x.astype(jnp.float32)
    mean = jnp.mean(xf, axis=-1, keepdims=True)
    var = jnp.mean((xf - mean) ** 2, axis=-1, keepdims=True)
    y = (xf - mean) / jnp.sqrt(var + _EPS) * gamma + beta
    return (y @ w.astype(jnp.float32) + b).astype(x.dtype)


def _run_case(key, B, N, D):
    kx, kg, kb, kw, kbias = jax.random.split(key, 5)
    x = jax.random.normal(kx, (B, N, D), dtype=jnp.float32)
    # Deterministic synthetic params (nn.LayerNorm default is weight=1, bias=0;
    # perturb so the affine part is actually exercised).
    gamma = 1.0 + 0.1 * jax.random.normal(kg, (D,), dtype=jnp.float32)
    beta = 0.1 * jax.random.normal(kb, (D,), dtype=jnp.float32)
    w = jax.random.normal(kw, (D, D), dtype=jnp.float32) / jnp.sqrt(D)
    b = 0.1 * jax.random.normal(kbias, (D,), dtype=jnp.float32)

    out = jax.block_until_ready(prenorm_forward(x, gamma, beta, w, b))
    ref = _reference(x, gamma, beta, w, b)
    assert out.shape == (B, N, D)
    assert jnp.allclose(out, ref, atol=2e-4, rtol=2e-4), \
        f"mismatch vs reference for shape {(B, N, D)}"


if __name__ == "__main__":
    key = jax.random.PRNGKey(0)
    k1, k2 = jax.random.split(key)
    # Small canonical shape (batch=2, seq=8, hidden=32).
    _run_case(k1, 2, 8, 32)
    # Exercise row- and lane-padding paths (rows not a multiple of 128, D < 128).
    _run_case(k2, 1, 200, 64)
    print("KERNEL_OK")
</pallas_src>

<mosaic_0001>
module attributes {stable_mosaic.version = 11 : i64} {
  func.func @_prenorm_kernel(%arg0: i32, %arg1: memref<16x128xf32, #tpu.memory_space<vmem>>, %arg2: memref<1x128xf32, #tpu.memory_space<vmem>>, %arg3: memref<1x128xf32, #tpu.memory_space<vmem>>, %arg4: memref<128x128xf32, #tpu.memory_space<vmem>>, %arg5: memref<1x128xf32, #tpu.memory_space<vmem>>, %arg6: memref<16x128xf32, #tpu.memory_space<vmem>>) attributes {dimension_semantics = [#tpu.dimension_semantics<parallel>], iteration_bounds = array<i64: 1>, scalar_prefetch = 0 : i64, scratch_operands = 0 : i64, tpu.core_type = #tpu.core_type<tc>, window_params = [{transform_indices = @transform_0, window_bounds = array<i64: 16, 128>}, {pipeline_mode = #tpu.pipeline_mode<synchronous>, transform_indices = @transform_1, window_bounds = array<i64: 1, 128>}, {pipeline_mode = #tpu.pipeline_mode<synchronous>, transform_indices = @transform_2, window_bounds = array<i64: 1, 128>}, {pipeline_mode = #tpu.pipeline_mode<synchronous>, transform_indices = @transform_3, window_bounds = array<i64: 128, 128>}, {pipeline_mode = #tpu.pipeline_mode<synchronous>, transform_indices = @transform_4, window_bounds = array<i64: 1, 128>}, {transform_indices = @transform_5, window_bounds = array<i64: 16, 128>}]} {
    %c0 = arith.constant 0 : index
    %c0_0 = arith.constant 0 : index
    %0 = vector.load %arg1[%c0, %c0_0] : memref<16x128xf32, #tpu.memory_space<vmem>>, vector<16x128xf32>
    %cst = arith.constant dense<0.000000e+00> : vector<16xf32>
    %1 = vector.multi_reduction <add>, %0, %cst [1] : vector<16x128xf32> to vector<16xf32>
    %2 = vector.shape_cast %1 : vector<16xf32> to vector<16x1xf32>
    %cst_1 = arith.constant 3.125000e-02 : f32
    %3 = vector.broadcast %cst_1 : f32 to vector<16x1xf32>
    %4 = arith.mulf %2, %3 : vector<16x1xf32>
    %5 = vector.broadcast %4 : vector<16x1xf32> to vector<16x128xf32>
    %6 = arith.subf %0, %5 : vector<16x128xf32>
    %7 = tpu.iota {dimensions = array<i32: 1>} : vector<16x128xi32>
    %c32_i32 = arith.constant 32 : i32
    %8 = vector.broadcast %c32_i32 : i32 to vector<16x128xi32>
    %9 = arith.cmpi slt, %7, %8 : vector<16x128xi32>
    %cst_2 = arith.constant 0.000000e+00 : f32
    %10 = vector.broadcast %cst_2 : f32 to vector<16x128xf32>
    %11 = arith.select %9, %6, %10 : vector<16x128xi1>, vector<16x128xf32>
    %12 = arith.mulf %11, %11 : vector<16x128xf32>
    %cst_3 = arith.constant dense<0.000000e+00> : vector<16xf32>
    %13 = vector.multi_reduction <add>, %12, %cst_3 [1] : vector<16x128xf32> to vector<16xf32>
    %14 = vector.shape_cast %13 : vector<16xf32> to vector<16x1xf32>
    %cst_4 = arith.constant 3.125000e-02 : f32
    %15 = vector.broadcast %cst_4 : f32 to vector<16x1xf32>
    %16 = arith.mulf %14, %15 : vector<16x1xf32>
    %cst_5 = arith.constant 9.99999974E-6 : f32
    %17 = vector.broadcast %cst_5 : f32 to vector<16x1xf32>
    %18 = arith.addf %16, %17 : vector<16x1xf32>
    %19 = math.rsqrt %18 : vector<16x1xf32>
    %20 = vector.broadcast %19 : vector<16x1xf32> to vector<16x128xf32>
    %21 = arith.mulf %11, %20 : vector<16x128xf32>
    %c0_6 = arith.constant 0 : index
    %c0_7 = arith.constant 0 : index
    %22 = vector.load %arg2[%c0_6, %c0_7] : memref<1x128xf32, #tpu.memory_space<vmem>>, vector<1x128xf32>
    %23 = vector.broadcast %22 : vector<1x128xf32> to vector<16x128xf32>
    %24 = arith.mulf %21, %23 : vector<16x128xf32>
    %c0_8 = arith.constant 0 : index
    %c0_9 = arith.constant 0 : index
    %25 = vector.load %arg3[%c0_8, %c0_9] : memref<1x128xf32, #tpu.memory_space<vmem>>, vector<1x128xf32>
    %26 = vector.broadcast %25 : vector<1x128xf32> to vector<16x128xf32>
    %27 = arith.addf %24, %26 : vector<16x128xf32>
    %c0_10 = arith.constant 0 : index
    %c0_11 = arith.constant 0 : index
    %28 = vector.load %arg4[%c0_10, %c0_11] : memref<128x128xf32, #tpu.memory_space<vmem>>, vector<128x128xf32>
    %cst_12 = arith.constant dense<0.000000e+00> : vector<16x128xf32>
    %29 = tpu.matmul %27, %28, %cst_12 {dimension_numbers = #tpu.dot_dimension_numbers<[1], [0], [0], [1], [0, 0, 1, 1], [], []>} : vector<16x128xf32>, vector<128x128xf32>, vector<16x128xf32> -> vector<16x128xf32>
    %c0_13 = arith.constant 0 : index
    %c0_14 = arith.constant 0 : index
    %30 = vector.load %arg5[%c0_13, %c0_14] : memref<1x128xf32, #tpu.memory_space<vmem>>, vector<1x128xf32>
    %31 = vector.broadcast %30 : vector<1x128xf32> to vector<16x128xf32>
    %32 = arith.addf %29, %31 : vector<16x128xf32>
    %c0_15 = arith.constant 0 : index
    %c0_16 = arith.constant 0 : index
    %33 = vector.load %arg6[%c0_15, %c0_16] : memref<16x128xf32, #tpu.memory_space<vmem>>, vector<16x128xf32>
    tpu.vector_store %arg6[%c0_15, %c0_16], %32 {strides = array<i32>} : memref<16x128xf32, #tpu.memory_space<vmem>>, vector<16x128xf32>,
    return
  }
  func.func @transform_0(%arg0: i32) -> (i32, i32) {
    %c0_i32 = arith.constant 0 : i32
    %c0_i32_0 = arith.constant 0 : i32
    return %arg0, %c0_i32 : i32, i32
  }
  func.func @transform_1(%arg0: i32) -> (i32, i32) {
    %c0_i32 = arith.constant 0 : i32
    %c0_i32_0 = arith.constant 0 : i32
    %c0_i32_1 = arith.constant 0 : i32
    return %c0_i32, %c0_i32_0 : i32, i32
  }
  func.func @transform_2(%arg0: i32) -> (i32, i32) {
    %c0_i32 = arith.constant 0 : i32
    %c0_i32_0 = arith.constant 0 : i32
    %c0_i32_1 = arith.constant 0 : i32
    return %c0_i32, %c0_i32_0 : i32, i32
  }
  func.func @transform_3(%arg0: i32) -> (i32, i32) {
    %c0_i32 = arith.constant 0 : i32
    %c0_i32_0 = arith.constant 0 : i32
    %c0_i32_1 = arith.constant 0 : i32
    return %c0_i32, %c0_i32_0 : i32, i32
  }
  func.func @transform_4(%arg0: i32) -> (i32, i32) {
    %c0_i32 = arith.constant 0 : i32
    %c0_i32_0 = arith.constant 0 : i32
    %c0_i32_1 = arith.constant 0 : i32
    return %c0_i32, %c0_i32_0 : i32, i32
  }
  func.func @transform_5(%arg0: i32) -> (i32, i32) {
    %c0_i32 = arith.constant 0 : i32
    %c0_i32_0 = arith.constant 0 : i32
    return %arg0, %c0_i32 : i32, i32
  }
}

</mosaic_0001>

<llo_original>
// kernel: prenorm_forward.1
$region0: #{prenorm_forward.1}
  #allocation0 [shape = 'u32[]', space=smem, size = 0x4, offset = 0x4, fixed_abs, tag = 'smem constant byte address 0x4 - core index']
  #allocation1 [shape = 'u32[144,128]{1,0:T(1,128)}', space=vmem, size = 0x12000, scoped, tag = 'internal scratch']
  %s0 = inlined_call_operand.vmem [shape: f32[16,128], index: 0, kind: input, shape index: {}]
  %s1 = inlined_call_operand.vmem [shape: f32[1,128], index: 1, kind: input, shape index: {}]
  %s2 = inlined_call_operand.vmem [shape: f32[1,128], index: 2, kind: input, shape index: {}]
  %s3 = inlined_call_operand.vmem [shape: f32[128,128], index: 3, kind: input, shape index: {}]
  %s4 = inlined_call_operand.vmem [shape: f32[1,128], index: 4, kind: input, shape index: {}]
  %s5 = inlined_call_operand.vmem [shape: f32[16,128], index: 5, kind: output, shape index: {}]
  %s6 = sld [smem:[#allocation0]]
  $region30: #{prenorm_forward.1} parent=0
    _
  %s8 = ssub.s32 1, %s6
  %s9 = scalar_select 0, %s8, %s6
  // Predicated region
  $region2: #{prenorm_forward.1} parent=0 // pred_check
    _
  $region3: #{prenorm_forward.1} parent=0 // pred_check_branch
    %11 = sbr.rel (0) target = $region5
  $region4: #{prenorm_forward.1} parent=0 // pred_region
    _
  $region5: #{prenorm_forward.1} parent=0 // pred_fallthru
    _
  // Predicated region
  $region6: #{prenorm_forward.1} parent=0 // pred_check
    _
  $region7: #{prenorm_forward.1} parent=0 // pred_check_branch
    %13 = sbr.rel (0) target = $region9
  $region8: #{prenorm_forward.1} parent=0 // pred_region
    _
  $region9: #{prenorm_forward.1} parent=0 // pred_fallthru
    _
  // Predicated region
  $region10: #{prenorm_forward.1} parent=0 // pred_check
    _
  $region11: #{prenorm_forward.1} parent=0 // pred_check_branch
    %15 = sbr.rel (0) target = $region13
  $region12: #{prenorm_forward.1} parent=0 // pred_region
    _
  $region13: #{prenorm_forward.1} parent=0 // pred_fallthru
    _
  // Predicated region
  $region14: #{prenorm_forward.1} parent=0 // pred_check
    _
  $region15: #{prenorm_forward.1} parent=0 // pred_check_branch
    %17 = sbr.rel (0) target = $region17
  $region16: #{prenorm_forward.1} parent=0 // pred_region
    _
  $region17: #{prenorm_forward.1} parent=0 // pred_fallthru
    _
  // Predicated region
  $region18: #{prenorm_forward.1} parent=0 // pred_check
    _
  $region19: #{prenorm_forward.1} parent=0 // pred_check_branch
    %19 = sbr.rel (0) target = $region21
  $region20: #{prenorm_forward.1} parent=0 // pred_region
    _
  $region21: #{prenorm_forward.1} parent=0 // pred_fallthru
    _
  %v20 = vld [vmem:[%s0] sm:$0xff]
  %v21 = vld [vmem:[%s0 + $0x8] sm:$0xff]
  %22 = vadd.xlane.f32.xlu0 %v20
  %v23 = vpop.xlane.xlu0 %22
  %24 = vadd.xlane.f32.xlu0 %v21
  %v25 = vpop.xlane.xlu0 %24
  %v26 = vmul.f32 %v23, 0.03125
  %v27 = vmul.f32 %v25, 0.03125
  %v28 = vsub.f32 %v20, %v26
  %v29 = vsub.f32 %v21, %v27
  %v30 = vlaneseq
  %v31 = vand.u32 %v30, 127
  %vm32 = vcmp.lt.s32.totalorder %v31, 32
  %v33 = vsel %vm32, %v28, 0.0
  %v34 = vsel %vm32, %v29, 0.0
  %v35 = vmul.f32 %v33, %v33
  %v36 = vmul.f32 %v34, %v34
  %37 = vadd.xlane.f32.xlu0 %v35
  %v38 = vpop.xlane.xlu0 %37
  %39 = vadd.xlane.f32.xlu0 %v36
  %v40 = vpop.xlane.xlu0 %39
  %v41 = vmul.f32 %v38, 0.03125
  %v42 = vmul.f32 %v40, 0.03125
  %v43 = vadd.f32 %v41, 1e-05
  %v44 = vadd.f32 %v42, 1e-05
  %v45 = vrsqrt.pop %v43
  %v46 = vrsqrt.pop %v44
  %v47 = vmul.f32 %v33, %v45
  %v48 = vmul.f32 %v34, %v46
  %v49 = vld [vmem:[%s1] sm:$0x1]
  %v51 = vlaneseq
  %v52 = vshrl.u32 %v51, 7
  %v53 = vsub.s32 0, %v52
  %v54 = vrot.slane %v49, %v53
  %v56 = vmul.f32 %v47, %v54
  %v57 = vmul.f32 %v48, %v54
  %v58 = vld [vmem:[%s2] sm:$0x1]
  %v60 = vlaneseq
  %v61 = vshrl.u32 %v60, 7
  %v62 = vsub.s32 0, %v61
  %v63 = vrot.slane %v58, %v62
  %v65 = vadd.f32 %v56, %v63
  %v66 = vadd.f32 %v57, %v63
  %v67 = vld [vmem:[%s3] sm:$0xff]
  %v68 = vld [vmem:[%s3 + $0x8] sm:$0xff]
  %v69 = vld [vmem:[%s3 + $0x10] sm:$0xff]
  %v70 = vld [vmem:[%s3 + $0x18] sm:$0xff]
  %v71 = vld [vmem:[%s3 + $0x20] sm:$0xff]
  %v72 = vld [vmem:[%s3 + $0x28] sm:$0xff]
  %v73 = vld [vmem:[%s3 + $0x30] sm:$0xff]
  %v74 = vld [vmem:[%s3 + $0x38] sm:$0xff]
  %v75 = vld [vmem:[%s3 + $0x40] sm:$0xff]
  %v76 = vld [vmem:[%s3 + $0x48] sm:$0xff]
  %v77 = vld [vmem:[%s3 + $0x50] sm:$0xff]
  %v78 = vld [vmem:[%s3 + $0x58] sm:$0xff]
  %v79 = vld [vmem:[%s3 + $0x60] sm:$0xff]
  %v80 = vld [vmem:[%s3 + $0x68] sm:$0xff]
  %v81 = vld [vmem:[%s3 + $0x70] sm:$0xff]
  %v82 = vld [vmem:[%s3 + $0x78] sm:$0xff]
  %v83 = vld [vmem:[%s4] sm:$0x1]
  %v85 = vlaneseq
  %v86 = vshrl.u32 %v85, 7
  %v87 = vsub.s32 0, %v86
  %v88 = vrot.slane %v83, %v87
  %90 = vmatprep.subr.mxu0 0.0
  %91 = vmatpush1.msra.mxu0 %v82
  %92 = vmatprep.subr.mxu0 0.0
  %93 = vmatpush1.msra.mxu0 %v81
  %94 = vmatprep.subr.mxu0 0.0
  %95 = vmatpush1.msra.mxu0 %v80
  %96 = vmatprep.subr.mxu0 0.0
  %97 = vmatpush1.msra.mxu0 %v79
  %98 = vmatprep.subr.mxu0 0.0
  %99 = vmatpush1.msra.mxu0 %v78
  %100 = vmatprep.subr.mxu0 0.0
  %101 = vmatpush1.msra.mxu0 %v77
  %102 = vmatprep.subr.mxu0 0.0
  %103 = vmatpush1.msra.mxu0 %v76
  %104 = vmatprep.subr.mxu0 0.0
  %105 = vmatpush1.msra.mxu0 %v75
  %106 = vmatprep.subr.mxu0 0.0
  %107 = vmatpush1.msra.mxu0 %v74
  %108 = vmatprep.subr.mxu0 0.0
  %109 = vmatpush1.msra.mxu0 %v73
  %110 = vmatprep.subr.mxu0 0.0
  %111 = vmatpush1.msra.mxu0 %v72
  %112 = vmatprep.subr.mxu0 0.0
  %113 = vmatpush1.msra.mxu0 %v71
  %114 = vmatprep.subr.mxu0 0.0
  %115 = vmatpush1.msra.mxu0 %v70
  %116 = vmatprep.subr.mxu0 0.0
  %117 = vmatpush1.msra.mxu0 %v69
  %118 = vmatprep.subr.mxu0 0.0
  %119 = vmatpush1.msra.mxu0 %v68
  %120 = vmatprep.subr.mxu0 0.0
  %121 = vmatpush1.msra.mxu0 %v67
  %122 = vmatprep.subr.mxu0 0.0
  %123 = vmatpush2.msra.mxu0 0.0
  %124 = vmatprep.subr.mxu0 0.0
  %125 = vmatpush2.msra.mxu0 0.0
  %126 = vmatprep.subr.mxu0 0.0
  %127 = vmatpush2.msra.mxu0 0.0
  %128 = vmatprep.subr.mxu0 0.0
  %129 = vmatpush2.msra.mxu0 0.0
  %130 = vmatprep.subr.mxu0 0.0
  %131 = vmatpush2.msra.mxu0 0.0
  %132 = vmatprep.subr.mxu0 0.0
  %133 = vmatpush2.msra.mxu0 0.0
  %134 = vmatprep.subr.mxu0 0.0
  %135 = vmatpush2.msra.mxu0 0.0
  %136 = vmatprep.subr.mxu0 0.0
  %137 = vmatpush2.msra.mxu0 0.0
  %138 = vmatprep.subr.mxu0 0.0
  %139 = vmatpush2.msra.mxu0 0.0
  %140 = vmatprep.subr.mxu0 0.0
  %141 = vmatpush2.msra.mxu0 0.0
  %142 = vmatprep.subr.mxu0 0.0
  %143 = vmatpush2.msra.mxu0 0.0
  %144 = vmatprep.subr.mxu0 0.0
  %145 = vmatpush2.msra.mxu0 0.0
  %146 = vmatprep.subr.mxu0 0.0
  %147 = vmatpush2.msra.mxu0 0.0
  %148 = vmatprep.subr.mxu0 0.0
  %149 = vmatpush2.msra.mxu0 0.0
  %150 = vmatprep.subr.mxu0 0.0
  %151 = vmatpush2.msra.mxu0 0.0
  %152 = vmatprep.subr.mxu0 0.0
  %153 = vmatpush2.msra.mxu0 0.0
  %154 = vmatprep.mubr.f32.mxu0 0.0
  %155 = vmatmul.mubr.f32.gmra.mxu0 %v65
  %v156 = vpop.f32.mrf.mxu0
  %v157 = vadd.f32 %v88, %v156
  %v158 = vpop.f32.mrf.mxu0
  %159 = vmatprep.mubr.f32.mxu0 0.0
  %160 = vmatmul.mubr.f32.gmra.mxu0 %v66
  %v161 = vpop.f32.mrf.mxu0
  %v162 = vadd.f32 %v88, %v161
  %v163 = vpop.f32.mrf.mxu0
  %164 = vdwg.mxu0
  %165 = vst [vmem:[%s5] sm:$0xff] %v157
  %166 = vst [vmem:[%s5 + $0x8] sm:$0xff] %v162
  // Predicated region
  $region22: #{prenorm_forward.1} parent=0 // pred_check
    _
  $region23: #{prenorm_forward.1} parent=0 // pred_check_branch
    %168 = sbr.rel (0) target = $region25
  $region24: #{prenorm_forward.1} parent=0 // pred_region
    _
  $region25: #{prenorm_forward.1} parent=0 // pred_fallthru
    _
  // Predicated region
  $region26: #{prenorm_forward.1} parent=0 // pred_check
    _
  $region27: #{prenorm_forward.1} parent=0 // pred_check_branch
    %170 = sbr.rel (0) target = $region29
  $region28: #{prenorm_forward.1} parent=0 // pred_region
    _
  $region29: #{prenorm_forward.1} parent=0 // pred_fallthru
    _

</llo_original>
